<compile_context>
chip_gen: v7x
topology: tpu7x:2x2x1
jax: 0.10.0
libtpu: 0.0.40
codegen_flags: <defaults>
</compile_context>

<pallas_src>
import math

import jax
import jax.numpy as jnp
from jax.experimental import pallas as pl
from jax.experimental.pallas import tpu as pltpu

EPSILON = 1e-07

# Per-input tile byte budget (generation-safe: fits double-buffered in the
# smallest scoped-VMEM default, v5e's 16 MiB, while staying on the ~85% HBM
# roofline plateau for the larger chips).
_TILE_BYTES_BUDGET = 2 * 1024 * 1024


def _round_up(x, m):
    return ((x + m - 1) // m) * m


def _sphere_ce_kernel(out_ref, target_ref, weight_ref, partial_ref):
    x = out_ref[...]          # (R, Dp) block
    t = target_ref[...]       # (R, Dp) block
    w = weight_ref[...]       # (1, Dp), broadcast across rows by the VPU
    # -target * log(clamp(out, eps, 1)) * weight
    loss = -t * jnp.log(jnp.clip(x, EPSILON, 1.0)) * w
    # One reduction per (large) block; per-block partials are summed outside.
    partial_ref[...] = jnp.reshape(jnp.sum(loss), (1, 1, 1))


def make_sphere_weight(h, w):
    """Deterministic sphere area weights, matching the PyTorch __init__."""
    theta_range = jnp.linspace(0.0, math.pi, h + 1)
    dtheta = math.pi / h
    dphi = 2.0 * math.pi / w
    row_w = dphi * (jnp.sin(theta_range[:-1]) + jnp.sin(theta_range[1:])) / 2.0 * dtheta
    return jnp.broadcast_to(row_w[:, None], (h, w)).astype(jnp.float32)


def sphere_ce(out, target, weight):
    batch, seq, h, w = out.shape
    d = h * w
    rows = batch * seq

    # Lane-dense flattening + padding of the minor dim to a multiple of 128.
    d_pad = _round_up(d, 128)
    out2 = out.reshape(rows, d).astype(jnp.float32)
    tgt2 = target.reshape(rows, d).astype(jnp.float32)
    wflat = weight.reshape(1, d).astype(jnp.float32)
    if d_pad != d:
        # target padding must be exactly 0 so padded lanes contribute nothing
        # (log(clip(.)) is always finite, so 0 * finite * finite == 0).
        out2 = jnp.pad(out2, ((0, 0), (0, d_pad - d)), constant_values=1.0)
        tgt2 = jnp.pad(tgt2, ((0, 0), (0, d_pad - d)))
        wflat = jnp.pad(wflat, ((0, 0), (0, d_pad - d)))

    # Row block: as many rows as fit the per-input tile budget, multiple of 8.
    bytes_per_row = d_pad * 4
    rows_by_budget = max(8, (_TILE_BYTES_BUDGET // bytes_per_row) // 8 * 8)
    block_rows = min(rows_by_budget, _round_up(rows, 8))
    rows_pad = _round_up(rows, block_rows)
    if rows_pad != rows:
        out2 = jnp.pad(out2, ((0, rows_pad - rows), (0, 0)), constant_values=1.0)
        tgt2 = jnp.pad(tgt2, ((0, rows_pad - rows), (0, 0)))

    num_blocks = rows_pad // block_rows

    n_elems = batch * seq * h * w
    cost = pl.CostEstimate(
        flops=5 * n_elems,                                   # neg, clip, 2 muls, adds
        transcendentals=n_elems,                             # log
        bytes_accessed=2 * n_elems * 4 + d * 4 + num_blocks * 4,
    )

    partials = pl.pallas_call(
        _sphere_ce_kernel,
        out_shape=jax.ShapeDtypeStruct((num_blocks, 1, 1), jnp.float32),
        grid=(num_blocks,),
        in_specs=[
            pl.BlockSpec((block_rows, d_pad), lambda i: (i, 0)),
            pl.BlockSpec((block_rows, d_pad), lambda i: (i, 0)),
            pl.BlockSpec((1, d_pad), lambda i: (0, 0)),       # resident weight row
        ],
        out_specs=pl.BlockSpec((1, 1, 1), lambda i: (i, 0, 0)),
        compiler_params=pltpu.CompilerParams(
            dimension_semantics=("parallel",),                # megacore on v7x
        ),
        cost_estimate=cost,
    )(out2, tgt2, wflat)

    # Tiny final reduction + /batch in plain JAX (also better f32 accuracy than
    # a single running scalar).
    return jnp.sum(partials) / jnp.float32(batch)


def sphere_ce_ref(out, target, weight):
    loss = -target * jnp.log(jnp.clip(out, EPSILON, 1.0)) * weight[None, None]
    return jnp.sum(loss) / out.shape[0]


if __name__ == "__main__":
    batch, seq, h, w = 2, 8, 16, 16

    key = jax.random.PRNGKey(0)
    k1, k2 = jax.random.split(key)
    out = jax.random.uniform(k1, (batch, seq, h, w), dtype=jnp.float32)
    target = jax.random.uniform(k2, (batch, seq, h, w), dtype=jnp.float32)

    weight = make_sphere_weight(h, w)

    loss = sphere_ce(out, target, weight)
    jax.block_until_ready(loss)

    ref = sphere_ce_ref(out, target, weight)
    assert jnp.allclose(loss, ref, rtol=1e-5, atol=1e-5), (loss, ref)

    print("KERNEL_OK")
</pallas_src>

<mosaic_0001>
module attributes {stable_mosaic.version = 11 : i64} {
  func.func @_sphere_ce_kernel(%arg0: i32, %arg1: memref<16x256xf32, #tpu.memory_space<vmem>>, %arg2: memref<16x256xf32, #tpu.memory_space<vmem>>, %arg3: memref<1x256xf32, #tpu.memory_space<vmem>>, %arg4: memref<1x1x1xf32, #tpu.memory_space<vmem>>) attributes {dimension_semantics = [#tpu.dimension_semantics<parallel>], iteration_bounds = array<i64: 1>, scalar_prefetch = 0 : i64, scratch_operands = 0 : i64, tpu.core_type = #tpu.core_type<tc>, window_params = [{transform_indices = @transform_0, window_bounds = array<i64: 16, 256>}, {transform_indices = @transform_1, window_bounds = array<i64: 16, 256>}, {pipeline_mode = #tpu.pipeline_mode<synchronous>, transform_indices = @transform_2, window_bounds = array<i64: 1, 256>}, {transform_indices = @transform_3, window_bounds = array<i64: 1, 1, 1>}]} {
    %c0 = arith.constant 0 : index
    %c0_0 = arith.constant 0 : index
    %0 = vector.load %arg1[%c0, %c0_0] : memref<16x256xf32, #tpu.memory_space<vmem>>, vector<16x256xf32>
    %c0_1 = arith.constant 0 : index
    %c0_2 = arith.constant 0 : index
    %1 = vector.load %arg2[%c0_1, %c0_2] : memref<16x256xf32, #tpu.memory_space<vmem>>, vector<16x256xf32>
    %c0_3 = arith.constant 0 : index
    %c0_4 = arith.constant 0 : index
    %2 = vector.load %arg3[%c0_3, %c0_4] : memref<1x256xf32, #tpu.memory_space<vmem>>, vector<1x256xf32>
    %cst = arith.constant 0.000000e+00 : f32
    %3 = vector.broadcast %cst : f32 to vector<16x256xf32>
    %4 = arith.subf %3, %1 : vector<16x256xf32>
    %cst_5 = arith.constant 1.000000e-07 : f32
    %cst_6 = arith.constant 1.000000e+00 : f32
    %5 = vector.broadcast %cst_5 : f32 to vector<16x256xf32>
    %6 = arith.maximumf %5, %0 : vector<16x256xf32>
    %7 = vector.broadcast %cst_6 : f32 to vector<16x256xf32>
    %8 = arith.minimumf %7, %6 : vector<16x256xf32>
    %9 = math.log %8 : vector<16x256xf32>
    %10 = arith.mulf %4, %9 : vector<16x256xf32>
    %11 = vector.broadcast %2 : vector<1x256xf32> to vector<16x256xf32>
    %12 = arith.mulf %10, %11 : vector<16x256xf32>
    %13 = vector.shape_cast %12 : vector<16x256xf32> to vector<1x16x256xf32>
    %cst_7 = arith.constant dense<0.000000e+00> : vector<1xf32>
    %14 = vector.multi_reduction <add>, %13, %cst_7 [1, 2] : vector<1x16x256xf32> to vector<1xf32>
    %15 = vector.shape_cast %14 : vector<1xf32> to vector<1x1x1xf32>
    %16 = vector.extract %15[0, 0, 0] : f32 from vector<1x1x1xf32>
    %17 = vector.broadcast %16 : f32 to vector<1x1x1xf32>
    %c0_8 = arith.constant 0 : index
    %c0_9 = arith.constant 0 : index
    %c0_10 = arith.constant 0 : index
    %18 = vector.load %arg4[%c0_8, %c0_9, %c0_10] : memref<1x1x1xf32, #tpu.memory_space<vmem>>, vector<1x1x1xf32>
    tpu.vector_store %arg4[%c0_8, %c0_9, %c0_10], %17 {strides = array<i32>} : memref<1x1x1xf32, #tpu.memory_space<vmem>>, vector<1x1x1xf32>,
    return
  }
  func.func @transform_0(%arg0: i32) -> (i32, i32) {
    %c0_i32 = arith.constant 0 : i32
    %c0_i32_0 = arith.constant 0 : i32
    return %arg0, %c0_i32 : i32, i32
  }
  func.func @transform_1(%arg0: i32) -> (i32, i32) {
    %c0_i32 = arith.constant 0 : i32
    %c0_i32_0 = arith.constant 0 : i32
    return %arg0, %c0_i32 : i32, i32
  }
  func.func @transform_2(%arg0: i32) -> (i32, i32) {
    %c0_i32 = arith.constant 0 : i32
    %c0_i32_0 = arith.constant 0 : i32
    %c0_i32_1 = arith.constant 0 : i32
    return %c0_i32, %c0_i32_0 : i32, i32
  }
  func.func @transform_3(%arg0: i32) -> (i32, i32, i32) {
    %c0_i32 = arith.constant 0 : i32
    %c0_i32_0 = arith.constant 0 : i32
    %c0_i32_1 = arith.constant 0 : i32
    return %arg0, %c0_i32, %c0_i32_0 : i32, i32, i32
  }
}

</mosaic_0001>

<llo_original>
// kernel: tpu_custom_call.1
$region0: #{tpu_custom_call.1}
  #allocation0 [shape = 'u32[]', space=smem, size = 0x4, offset = 0x4, fixed_abs, tag = 'smem constant byte address 0x4 - core index']
  #allocation1 [shape = 'u32[144,128]{1,0:T(1,128)}', space=vmem, size = 0x12000, scoped, tag = 'internal scratch']
  %s0 = inlined_call_operand.hbm [shape: f32[16,256], index: 0, kind: input, shape index: {}]
  %s1 = inlined_call_operand.hbm [shape: f32[16,256], index: 1, kind: input, shape index: {}]
  %s2 = inlined_call_operand.vmem [shape: f32[1,256], index: 2, kind: input, shape index: {}]
  %s3 = inlined_call_operand.hbm [shape: f32[1,1,1], index: 3, kind: output, shape index: {}]
  %s4 = sld [smem:[#allocation0]]
  $region30: #{tpu_custom_call.1} parent=0
    _
  %s6 = ssub.s32 1, %s4
  %s7 = scalar_select 0, %s6, %s4
  $region1: #{tpu_custom_call.1} parent=0
    #allocation2 [shape = 'u8[16384]{0}', space=vmem, size = 0x4000, scoped, tag = 'input window, operand 0, single buffered']
    #allocation3 [shape = 's32[1]{0}', space=sflag, size = 0x4, scoped, tag = 'scoped memory for tpu_custom_call.1']
    #allocation4 [shape = 's32[1]{0}', space=sflag, size = 0x4, scoped, tag = 'scoped memory for tpu_custom_call.1']
    #allocation5 [shape = 'u8[16384]{0}', space=vmem, size = 0x4000, scoped, tag = 'input window, operand 1, single buffered']
    #allocation6 [shape = 's32[1]{0}', space=sflag, size = 0x4, scoped, tag = 'scoped memory for tpu_custom_call.1']
    #allocation7 [shape = 'u8[512]{0}', space=vmem, size = 0x400, scoped, tag = 'output window, operand 0, single buffered']
    %8 = vsyncpa [#allocation3], 0
    %9 = vsyncpa [#allocation6], 0
    %10 = vsyncpa [#allocation4], 0
    // Predicated region
    $region2: #{tpu_custom_call.1} parent=1 // pred_check
      _
    $region3: #{tpu_custom_call.1} parent=1 // pred_check_branch
      %12 = sbr.rel (0) target = $region5
    $region4: #{tpu_custom_call.1} parent=1 // pred_region
      %s14 = ssub.s32 512, 512
      %15 = vsyncadd [#allocation3], %s14
      %s16 = sshll.u32 [#allocation2], 4
      %s17 = int_to_ptr.vmem [resolvable:$true] %s16
      %22 = dma.hbm_to_vmem [thread:$0]  %s0, 512, %s17, [#allocation3], 256, 256, 16
    $region5: #{tpu_custom_call.1} parent=1 // pred_fallthru
      _
    // Predicated region
    $region6: #{tpu_custom_call.1} parent=1 // pred_check
      _
    $region7: #{tpu_custom_call.1} parent=1 // pred_check_branch
      %24 = sbr.rel (0) target = $region9
    $region8: #{tpu_custom_call.1} parent=1 // pred_region
      %s26 = ssub.s32 512, 512
      %27 = vsyncadd [#allocation6], %s26
      %s28 = sshll.u32 [#allocation5], 4
      %s29 = int_to_ptr.vmem [resolvable:$true] %s28
      %34 = dma.hbm_to_vmem [thread:$0]  %s1, 512, %s29, [#allocation6], 256, 256, 16
    $region9: #{tpu_custom_call.1} parent=1 // pred_fallthru
      _
    // Predicated region
    $region10: #{tpu_custom_call.1} parent=1 // pred_check
      _
    $region11: #{tpu_custom_call.1} parent=1 // pred_check_branch
      %36 = sbr.rel (0) target = $region13
    $region12: #{tpu_custom_call.1} parent=1 // pred_region
      _
    $region13: #{tpu_custom_call.1} parent=1 // pred_fallthru
      _
    // Predicated region
    $region14: #{tpu_custom_call.1} parent=1 // pred_check
      _
    $region15: #{tpu_custom_call.1} parent=1 // pred_check_branch
      %38 = sbr.rel (0) target = $region17
    $region16: #{tpu_custom_call.1} parent=1 // pred_region
      %39 = dma.done [#allocation3], 512
    $region17: #{tpu_custom_call.1} parent=1 // pred_fallthru
      _
    // Predicated region
    $region18: #{tpu_custom_call.1} parent=1 // pred_check
      _
    $region19: #{tpu_custom_call.1} parent=1 // pred_check_branch
      %41 = sbr.rel (0) target = $region21
    $region20: #{tpu_custom_call.1} parent=1 // pred_region
      %42 = dma.done [#allocation6], 512
    $region21: #{tpu_custom_call.1} parent=1 // pred_fallthru
      _
    %v43 = vld [vmem:[#allocation2] sm:$0xff]
    %v44 = vld [vmem:[#allocation2 + $0x8] sm:$0xff]
    %v45 = vld [vmem:[#allocation2 + $0x10] sm:$0xff]
    %v46 = vld [vmem:[#allocation2 + $0x18] sm:$0xff]
    %v47 = vld [vmem:[#allocation5] sm:$0xff]
    %v48 = vld [vmem:[#allocation5 + $0x8] sm:$0xff]
    %v49 = vld [vmem:[#allocation5 + $0x10] sm:$0xff]
    %v50 = vld [vmem:[#allocation5 + $0x18] sm:$0xff]
    %v51 = vld [vmem:[%s2] sm:$0x3]
    %v52 = vsub.f32 0.0, %v47
    %v53 = vsub.f32 0.0, %v48
    %v54 = vsub.f32 0.0, %v49
    %v55 = vsub.f32 0.0, %v50
    %v56 = vmax.f32 %v43, 1e-07
    %v57 = vmax.f32 %v44, 1e-07
    %v58 = vmax.f32 %v45, 1e-07
    %v59 = vmax.f32 %v46, 1e-07
    %v60 = vmin.f32 %v56, 1.0
    %v61 = vmin.f32 %v57, 1.0
    %v62 = vmin.f32 %v58, 1.0
    %v63 = vmin.f32 %v59, 1.0
    %v64 = vlog2.pop %v60
    %v65 = vmul.f32 %v64, 0.6931472
    %v66 = vlog2.pop %v61
    %v67 = vmul.f32 %v66, 0.6931472
    %v68 = vlog2.pop %v62
    %v69 = vmul.f32 %v68, 0.6931472
    %v70 = vlog2.pop %v63
    %v71 = vmul.f32 %v70, 0.6931472
    %v72 = vmul.f32 %v52, %v65
    %v73 = vmul.f32 %v53, %v67
    %v74 = vmul.f32 %v54, %v69
    %v75 = vmul.f32 %v55, %v71
    %v77 = vlaneseq
    %v78 = vshrl.u32 %v77, 7
    %v79 = vsub.s32 0, %v78
    %v80 = vrot.slane %v51, %v79
    %v81 = vlaneseq
    %v82 = vshrl.u32 %v81, 7
    %v83 = vsub.s32 1, %v82
    %v84 = vrot.slane %v51, %v83
    %v87 = vmul.f32 %v72, %v80
    %v88 = vmul.f32 %v73, %v84
    %v89 = vmul.f32 %v74, %v80
    %v90 = vmul.f32 %v75, %v84
    %v91 = vadd.f32 %v87, %v88
    %v92 = vadd.f32 %v91, %v89
    %v93 = vadd.f32 %v92, %v90
    %94 = vadd.xlane.f32.xlu0 %v93
    %v95 = vpop.xlane.xlu0 %94
    %v96 = vrot.slane %v95, 4
    %v97 = vadd.f32 %v95, %v96
    %v98 = vrot.slane %v97, 2
    %v99 = vadd.f32 %v97, %v98
    %v100 = vrot.slane %v99, 1
    %v101 = vadd.f32 %v99, %v100
    %s102 = vtos %v101
    %v103 = vstv %s102
    %vm104 = vcmask 0
    %105 = vst.msk [vmem:[#allocation7] sm:$0x1] %vm104, %v103
    // Predicated region
    $region22: #{tpu_custom_call.1} parent=1 // pred_check
      _
    $region23: #{tpu_custom_call.1} parent=1 // pred_check_branch
      %107 = sbr.rel (0) target = $region25
    $region24: #{tpu_custom_call.1} parent=1 // pred_region
      %s109 = ssub.s32 16, 16
      %110 = vsyncadd [#allocation4], %s109
      %s112 = sshll.u32 [#allocation7], 4
      %s113 = int_to_ptr.vmem [resolvable:$true] %s112
      %115 = dma.vmem_to_hbm [thread:$0]  %s113, 16, %s3, [#allocation4]
    $region25: #{tpu_custom_call.1} parent=1 // pred_fallthru
      _
    // Predicated region
    $region26: #{tpu_custom_call.1} parent=1 // pred_check
      _
    $region27: #{tpu_custom_call.1} parent=1 // pred_check_branch
      %117 = sbr.rel (0) target = $region29
    $region28: #{tpu_custom_call.1} parent=1 // pred_region
      %118 = dma.done [#allocation4], 16
    $region29: #{tpu_custom_call.1} parent=1 // pred_fallthru
      _
    %119 = vsyncpa [#allocation3], 1
    %120 = vsyncpa [#allocation6], 1
    %121 = vsyncpa [#allocation4], 1

</llo_original>
